<compile_context>
chip_gen: v7x
topology: tpu7x:2x2x1
jax: 0.10.0
libtpu: 0.0.40
codegen_flags: <defaults>
</compile_context>

<pallas_src>
import functools
import math

import jax
import jax.numpy as jnp
from jax import lax
from jax.experimental import pallas as pl
from jax.experimental.pallas import tpu as pltpu

_NEG_INF = -1e30


def _round_up(x, m):
    return (x + m - 1) // m * m


def _supcon_kernel(*refs, tm, tn, n_valid, has_mask, check_valid):
    """Flash-style tiled SupCon loss.

    Grid = (row_blocks, col_blocks); the column axis (last, "arbitrary") is the
    softmax-denominator reduction.  Per row block we keep online-LSE
    accumulators in VMEM scratch and emit one [tm, 1] per-anchor value at the
    final column step (labels path: LSE only; mask path: lse - sum_pos/count).
    """
    if has_mask:
        mask_ref, rowf_ref, colf_ref, o_ref, m_sc, l_sc, s_sc, c_sc = refs
    else:
        rowf_ref, colf_ref, o_ref, m_sc, l_sc = refs
        s_sc = c_sc = None

    i = pl.program_id(0)
    j = pl.program_id(1)
    nj = pl.num_programs(1)

    @pl.when(j == 0)
    def _init():
        m_sc[...] = jnp.full((tm, 1), _NEG_INF, jnp.float32)
        l_sc[...] = jnp.zeros((tm, 1), jnp.float32)
        if has_mask:
            s_sc[...] = jnp.zeros((tm, 1), jnp.float32)
            c_sc[...] = jnp.zeros((tm, 1), jnp.float32)

    # Row features are pre-scaled by 1/temperature in the wrapper, so `s` is
    # already the scaled logits.  Contraction on the trailing dims of both
    # tiles (A @ B^T without a transpose), f32 accumulation on the MXU.
    s = lax.dot_general(
        rowf_ref[...], colf_ref[...],
        dimension_numbers=(((1,), (1,)), ((), ())),
        preferred_element_type=jnp.float32)                   # [tm, tn]

    m_prev = m_sc[...]
    m_new = jnp.maximum(m_prev, jnp.max(s, axis=1, keepdims=True))
    alpha = jnp.exp(m_prev - m_new)

    row_lo = i * tm
    col_lo = j * tn
    # Does this tile intersect the diagonal / contain zero-padded columns?
    touches_diag = jnp.logical_and(col_lo < row_lo + tm, row_lo < col_lo + tn)
    if check_valid:
        needs_mask = jnp.logical_or(touches_diag, col_lo + tn > n_valid)
    else:
        needs_mask = touches_diag

    def _accum_denom(keep_f):
        p = jnp.exp(s - m_new)
        if keep_f is not None:
            p = p * keep_f
        l_sc[...] = alpha * l_sc[...] + jnp.sum(p, axis=1, keepdims=True)

    @pl.when(needs_mask)
    def _slow():
        row_ids = row_lo + lax.broadcasted_iota(jnp.int32, (tm, 1), 0)
        col_ids = col_lo + lax.broadcasted_iota(jnp.int32, (1, tn), 1)
        keep = row_ids != col_ids                  # drop self-contrast
        if check_valid:
            keep = jnp.logical_and(keep, col_ids < n_valid)  # drop padded cols
        _accum_denom(keep.astype(jnp.float32))

    @pl.when(jnp.logical_not(needs_mask))
    def _fast():                                   # interior tile: no masking
        _accum_denom(None)

    m_sc[...] = m_new

    if has_mask:
        # Explicit (possibly asymmetric) mask: accumulate positive terms
        # per tile.  Padded rows/cols of the mask are zero, so only tiles
        # touching the diagonal need the self-contrast removal.
        def _accum_pos(pos):
            s_sc[...] = s_sc[...] + jnp.sum(pos * s, axis=1, keepdims=True)
            c_sc[...] = c_sc[...] + jnp.sum(pos, axis=1, keepdims=True)

        @pl.when(touches_diag)
        def _pos_diag():
            row_ids = row_lo + lax.broadcasted_iota(jnp.int32, (tm, 1), 0)
            col_ids = col_lo + lax.broadcasted_iota(jnp.int32, (1, tn), 1)
            _accum_pos(mask_ref[...] * (row_ids != col_ids).astype(jnp.float32))

        @pl.when(jnp.logical_not(touches_diag))
        def _pos_plain():
            _accum_pos(mask_ref[...])

    @pl.when(j == nj - 1)
    def _finalize():
        lse = m_sc[...] + jnp.log(l_sc[...])
        if has_mask:
            o_ref[...] = lse - s_sc[...] / c_sc[...]   # = -mean_log_prob_pos
        else:
            o_ref[...] = lse                           # positives added in wrapper


def supcon_loss_v2(features, features_aug=None, labels=None, mask=None, *,
                   temperature=0.07, contrast_mode='all',
                   block_q=None, block_k=None, compute_dtype=jnp.bfloat16):
    """JAX/Pallas equivalent of SupConLossV2.forward (n_views == 1). Scalar."""
    del features_aug                       # unused by the reference forward
    features = jnp.asarray(features)
    if features.ndim < 3:
        raise ValueError('`features` needs to be [bsz, n_views, ...], '
                         'at least 3 dimensions are required')
    bsz = features.shape[0]
    n_views = features.shape[1]
    feats = features.reshape(bsz, n_views, -1)
    dim_emb = feats.shape[-1]

    if labels is not None and mask is not None:
        raise ValueError('Cannot define both `labels` and `mask`')
    if contrast_mode not in ('one', 'all'):
        raise ValueError(f'Unknown mode: {contrast_mode}')
    if n_views != 1:
        # The reference forward only broadcasts correctly for n_views == 1.
        raise ValueError('SupConLossV2 (as written) requires n_views == 1')

    feat_f32 = feats.reshape(-1, dim_emb).astype(jnp.float32)
    n = feat_f32.shape[0]
    inv_t = float(1.0 / temperature)

    has_mask = mask is not None
    sum_pos = pos_cnt = None
    if has_mask:
        mask = jnp.asarray(mask, jnp.float32)
        if mask.shape != (n, n):
            raise ValueError('`mask` must be [bsz, bsz]')
    else:
        if labels is None:
            # mask = eye(bsz): every sample is its own class (SimCLR-like;
            # degenerates to 0/0 for n_views == 1, same as the PyTorch ref).
            labels_vec = jnp.arange(n, dtype=jnp.int32)
        else:
            labels_vec = jnp.asarray(labels).reshape(-1).astype(jnp.int32)
            if labels_vec.shape[0] != n:
                raise ValueError('Num of labels does not match num of features')
        # Analytic positives: sum_j mask_ij * logits_ij and the positive count
        # only need per-class feature sums, so the kernel only computes the LSE.
        _, class_id = jnp.unique(labels_vec, return_inverse=True, size=n)
        class_id = class_id.reshape(-1)
        class_sum = jax.ops.segment_sum(feat_f32, class_id, num_segments=n)
        class_cnt = jax.ops.segment_sum(jnp.ones((n,), jnp.float32), class_id,
                                        num_segments=n)
        sum_pos = inv_t * (jnp.sum(feat_f32 * class_sum[class_id], axis=-1)
                           - jnp.sum(feat_f32 * feat_f32, axis=-1))
        pos_cnt = class_cnt[class_id] - 1.0        # 0/0 -> NaN, same as PyTorch

    # ---- tiling -------------------------------------------------------------
    d_pad = _round_up(dim_emb, 128)                # lane-aligned MXU contraction
    if block_q is None and block_k is None:
        if n <= 512:
            if n < 16:
                tm = _round_up(max(n, 8), 8)
                n_pad = tm
            else:
                # >= 2 row blocks so both v7x TensorCores get work.
                tm = _round_up((n + 1) // 2, 8)
                n_pad = 2 * tm
            tn = n_pad                             # single column block
        else:
            tm = 512 if d_pad <= 1024 else 256     # cut column re-streaming
            tn = 512
            n_pad = _round_up(n, math.lcm(tm, tn))
    else:
        tm = 256 if block_q is None else int(block_q)
        tn = 512 if block_k is None else int(block_k)
        if tm % 8 or tn % 128:
            raise ValueError('block_q must be a multiple of 8 and block_k a '
                             'multiple of 128')
        n_pad = _round_up(n, math.lcm(tm, tn))
    check_valid = n_pad != n

    # Row side pre-scaled by 1/T in f32 (cheap, O(N*D)); column side raw.
    # Zero padding does not change the dot products.
    row_feat = jnp.pad((feat_f32 * inv_t).astype(compute_dtype),
                       ((0, n_pad - n), (0, d_pad - dim_emb)))
    col_feat = jnp.pad(feat_f32.astype(compute_dtype),
                       ((0, n_pad - n), (0, d_pad - dim_emb)))

    grid = (n_pad // tm, n_pad // tn)
    kernel = functools.partial(
        _supcon_kernel, tm=tm, tn=tn, n_valid=n, has_mask=has_mask,
        check_valid=check_valid)

    feat_row_spec = pl.BlockSpec((tm, d_pad), lambda i, j: (i, 0))
    feat_col_spec = pl.BlockSpec((tn, d_pad), lambda i, j: (j, 0))
    scratch = [pltpu.VMEM((tm, 1), jnp.float32)] * (4 if has_mask else 2)

    if has_mask:
        # TODO(synk): stream the mask as int8 (needs sublane-packed tiling care).
        mask_p = jnp.pad(mask, ((0, n_pad - n), (0, n_pad - n)))
        inputs = (mask_p, row_feat, col_feat)
        in_specs = [pl.BlockSpec((tm, tn), lambda i, j: (i, j)),
                    feat_row_spec, feat_col_spec]
    else:
        inputs = (row_feat, col_feat)
        in_specs = [feat_row_spec, feat_col_spec]

    # VMEM budget: double-buffered feature tiles (+ mask tiles) + f32 temporaries.
    itemsize = jnp.dtype(compute_dtype).itemsize
    vmem_est = 2 * (tm + tn) * d_pad * itemsize + 8 * tm * tn * 4
    if has_mask:
        vmem_est += 2 * tm * tn * 4
    vmem_limit = int(min(max(vmem_est, 4 * 1024 * 1024), 32 * 1024 * 1024))

    per_row = pl.pallas_call(
        kernel,
        out_shape=jax.ShapeDtypeStruct((n_pad, 1), jnp.float32),
        grid=grid,
        in_specs=in_specs,
        out_specs=pl.BlockSpec((tm, 1), lambda i, j: (i, 0)),
        scratch_shapes=scratch,
        compiler_params=pltpu.CompilerParams(
            dimension_semantics=("parallel", "arbitrary"),
            vmem_limit_bytes=vmem_limit),
    )(*inputs)

    per_row = per_row[:n, 0]                       # drop padded rows
    if has_mask:
        neg_mlpp = per_row                         # kernel emitted lse - sum_pos/count
    else:
        neg_mlpp = per_row - sum_pos / pos_cnt     # kernel emitted lse only
    # loss = (-mean_log_prob_pos).view(anchor_count, batch_size).mean()
    return jnp.mean(neg_mlpp)


def _reference_loss(feat2d, mask, temperature):
    """Pure-JAX (f32) mirror of the PyTorch forward (n_views == 1)."""
    n = feat2d.shape[0]
    feat = feat2d.astype(jnp.float32)
    adc = (feat @ feat.T) / temperature
    logits = adc - jnp.max(adc, axis=1, keepdims=True)
    logits_mask = 1.0 - jnp.eye(n, dtype=jnp.float32)
    mask = mask.astype(jnp.float32) * logits_mask
    exp_logits = jnp.exp(logits) * logits_mask
    log_prob = logits - jnp.log(exp_logits.sum(1, keepdims=True))
    mlpp = (mask * log_prob).sum(1) / mask.sum(1)
    return jnp.mean(-mlpp)


if __name__ == "__main__":
    key = jax.random.PRNGKey(0)
    temperature = 0.07

    # ---- test 1: labels path, small, f32 compute ----------------------------
    bsz, n_views, dim_emb = 8, 1, 32
    k1, k2 = jax.random.split(key)
    feats = jax.random.normal(k1, (bsz, n_views, dim_emb), dtype=jnp.float32)
    # SupCon expects L2-normalized embeddings (unnormalized inputs with T=0.07
    # under/overflow exp() in both the kernel and the reference).
    feats = feats / jnp.linalg.norm(feats, axis=-1, keepdims=True)
    labels = jnp.array([0, 0, 1, 1, 2, 2, 3, 3], dtype=jnp.int32)
    mask_from_labels = (labels[:, None] == labels[None, :]).astype(jnp.float32)
    ref1 = _reference_loss(feats.reshape(bsz, dim_emb), mask_from_labels,
                           temperature)

    loss1 = jax.block_until_ready(
        supcon_loss_v2(feats, None, labels=labels, temperature=temperature,
                       compute_dtype=jnp.float32))
    assert bool(jnp.isfinite(loss1)), loss1
    assert jnp.allclose(loss1, ref1, rtol=2e-2, atol=2e-2), (loss1, ref1)

    # ---- test 2: explicit-mask path -----------------------------------------
    loss2 = jax.block_until_ready(
        supcon_loss_v2(feats, None, mask=mask_from_labels,
                       temperature=temperature, compute_dtype=jnp.float32))
    assert bool(jnp.isfinite(loss2)), loss2
    assert jnp.allclose(loss2, ref1, rtol=2e-2, atol=2e-2), (loss2, ref1)

    # ---- test 3: multi-tile grid, padded rows/cols, user block sizes --------
    bsz3 = 300
    k3, _ = jax.random.split(k2)
    feats3 = jax.random.normal(k3, (bsz3, 1, dim_emb), dtype=jnp.float32)
    feats3 = feats3 / jnp.linalg.norm(feats3, axis=-1, keepdims=True)
    labels3 = jnp.repeat(jnp.arange(bsz3 // 2, dtype=jnp.int32), 2)
    mask3 = (labels3[:, None] == labels3[None, :]).astype(jnp.float32)
    ref3 = _reference_loss(feats3.reshape(bsz3, dim_emb), mask3, temperature)

    loss3 = jax.block_until_ready(
        supcon_loss_v2(feats3, None, labels=labels3, temperature=temperature,
                       block_q=64, block_k=128, compute_dtype=jnp.float32))
    assert bool(jnp.isfinite(loss3)), loss3
    assert jnp.allclose(loss3, ref3, rtol=2e-2, atol=2e-2), (loss3, ref3)

    # ---- test 4: auto tiling (2 row blocks), default bf16 MXU path ----------
    loss4 = jax.block_until_ready(
        supcon_loss_v2(feats3, None, labels=labels3, temperature=temperature))
    assert bool(jnp.isfinite(loss4)), loss4
    assert jnp.allclose(loss4, ref3, rtol=3e-2, atol=3e-2), (loss4, ref3)

    print("KERNEL_OK")
</pallas_src>

<mosaic_0001>
module attributes {stable_mosaic.version = 11 : i64} {
  func.func @_supcon_kernel(%arg0: i32, %arg1: i32, %arg2: memref<8x128xf32, #tpu.memory_space<vmem>>, %arg3: memref<8x128xf32, #tpu.memory_space<vmem>>, %arg4: memref<8x1xf32, #tpu.memory_space<vmem>>, %arg5: memref<8x1xf32, #tpu.memory_space<vmem>>, %arg6: memref<8x1xf32, #tpu.memory_space<vmem>>) attributes {dimension_semantics = [#tpu.dimension_semantics<parallel>, #tpu.dimension_semantics<arbitrary>], iteration_bounds = array<i64: 1, 1>, scalar_prefetch = 0 : i64, scratch_operands = 2 : i64, tpu.core_type = #tpu.core_type<tc>, window_params = [{transform_indices = @transform_0, window_bounds = array<i64: 8, 128>}, {transform_indices = @transform_1, window_bounds = array<i64: 8, 128>}, {transform_indices = @transform_2, window_bounds = array<i64: 8, 1>}]} {
    %c0_i32 = arith.constant 0 : i32
    %0 = arith.cmpi eq, %arg1, %c0_i32 : i32
    %1 = arith.extui %0 : i1 to i32
    %c0_i32_0 = arith.constant 0 : i32
    %2 = arith.cmpi ne, %1, %c0_i32_0 : i32
    scf.if %2 {
      %cst_16 = arith.constant -1.000000e+30 : f32
      %28 = vector.broadcast %cst_16 : f32 to vector<8x1xf32>
      %c0_17 = arith.constant 0 : index
      %c0_18 = arith.constant 0 : index
      %29 = vector.load %arg5[%c0_17, %c0_18] : memref<8x1xf32, #tpu.memory_space<vmem>>, vector<8x1xf32>
      tpu.vector_store %arg5[%c0_17, %c0_18], %28 {strides = array<i32>} : memref<8x1xf32, #tpu.memory_space<vmem>>, vector<8x1xf32>,
      %cst_19 = arith.constant 0.000000e+00 : f32
      %30 = vector.broadcast %cst_19 : f32 to vector<8x1xf32>
      %c0_20 = arith.constant 0 : index
      %c0_21 = arith.constant 0 : index
      %31 = vector.load %arg6[%c0_20, %c0_21] : memref<8x1xf32, #tpu.memory_space<vmem>>, vector<8x1xf32>
      tpu.vector_store %arg6[%c0_20, %c0_21], %30 {strides = array<i32>} : memref<8x1xf32, #tpu.memory_space<vmem>>, vector<8x1xf32>,
    } else {
    }
    %c0 = arith.constant 0 : index
    %c0_1 = arith.constant 0 : index
    %3 = vector.load %arg2[%c0, %c0_1] : memref<8x128xf32, #tpu.memory_space<vmem>>, vector<8x128xf32>
    %c0_2 = arith.constant 0 : index
    %c0_3 = arith.constant 0 : index
    %4 = vector.load %arg3[%c0_2, %c0_3] : memref<8x128xf32, #tpu.memory_space<vmem>>, vector<8x128xf32>
    %cst = arith.constant dense<0.000000e+00> : vector<8x8xf32>
    %5 = tpu.matmul %3, %4, %cst {dimension_numbers = #tpu.dot_dimension_numbers<[1], [1], [0], [0], [0, 0, 1, 0], [], []>} : vector<8x128xf32>, vector<8x128xf32>, vector<8x8xf32> -> vector<8x8xf32>
    %c0_4 = arith.constant 0 : index
    %c0_5 = arith.constant 0 : index
    %6 = vector.load %arg5[%c0_4, %c0_5] : memref<8x1xf32, #tpu.memory_space<vmem>>, vector<8x1xf32>
    %cst_6 = arith.constant dense<0xFF800000> : vector<8xf32>
    %7 = vector.multi_reduction <maximumf>, %5, %cst_6 [1] : vector<8x8xf32> to vector<8xf32>
    %8 = vector.shape_cast %7 : vector<8xf32> to vector<8x1xf32>
    %9 = arith.maximumf %6, %8 : vector<8x1xf32>
    %10 = arith.subf %6, %9 : vector<8x1xf32>
    %11 = math.exp %10 : vector<8x1xf32>
    %c8_i32 = arith.constant 8 : i32
    %12 = arith.muli %arg0, %c8_i32 : i32
    %c8_i32_7 = arith.constant 8 : i32
    %13 = arith.muli %arg1, %c8_i32_7 : i32
    %c8_i32_8 = arith.constant 8 : i32
    %14 = arith.addi %12, %c8_i32_8 : i32
    %15 = arith.cmpi slt, %13, %14 : i32
    %c8_i32_9 = arith.constant 8 : i32
    %16 = arith.addi %13, %c8_i32_9 : i32
    %17 = arith.cmpi slt, %12, %16 : i32
    %18 = arith.andi %15, %17 : i1
    %19 = arith.extui %18 : i1 to i32
    %c0_i32_10 = arith.constant 0 : i32
    %20 = arith.cmpi ne, %19, %c0_i32_10 : i32
    scf.if %20 {
      %28 = tpu.iota {dimensions = array<i32: 0>} : vector<8x1xi32>
      %29 = vector.broadcast %12 : i32 to vector<8x1xi32>
      %30 = arith.addi %29, %28 : vector<8x1xi32>
      %31 = tpu.iota {dimensions = array<i32: 1>} : vector<1x8xi32>
      %32 = vector.broadcast %13 : i32 to vector<1x8xi32>
      %33 = arith.addi %32, %31 : vector<1x8xi32>
      %34 = vector.broadcast %30 : vector<8x1xi32> to vector<8x8xi32>
      %35 = vector.broadcast %33 : vector<1x8xi32> to vector<8x8xi32>
      %36 = arith.cmpi ne, %34, %35 : vector<8x8xi32>
      %37 = arith.extui %36 : vector<8x8xi1> to vector<8x8xi32>
      %38 = arith.sitofp %37 : vector<8x8xi32> to vector<8x8xf32>
      %39 = vector.broadcast %9 : vector<8x1xf32> to vector<8x8xf32>
      %40 = arith.subf %5, %39 : vector<8x8xf32>
      %41 = math.exp %40 : vector<8x8xf32>
      %42 = arith.mulf %41, %38 : vector<8x8xf32>
      %c0_16 = arith.constant 0 : index
      %c0_17 = arith.constant 0 : index
      %43 = vector.load %arg6[%c0_16, %c0_17] : memref<8x1xf32, #tpu.memory_space<vmem>>, vector<8x1xf32>
      %44 = arith.mulf %11, %43 : vector<8x1xf32>
      %cst_18 = arith.constant dense<0.000000e+00> : vector<8xf32>
      %45 = vector.multi_reduction <add>, %42, %cst_18 [1] : vector<8x8xf32> to vector<8xf32>
      %46 = vector.shape_cast %45 : vector<8xf32> to vector<8x1xf32>
      %47 = arith.addf %44, %46 : vector<8x1xf32>
      %c0_19 = arith.constant 0 : index
      %c0_20 = arith.constant 0 : index
      %48 = vector.load %arg6[%c0_19, %c0_20] : memref<8x1xf32, #tpu.memory_space<vmem>>, vector<8x1xf32>
      tpu.vector_store %arg6[%c0_19, %c0_20], %47 {strides = array<i32>} : memref<8x1xf32, #tpu.memory_space<vmem>>, vector<8x1xf32>,
    } else {
    }
    %true = arith.constant true
    %21 = arith.xori %18, %true : i1
    %22 = arith.extui %21 : i1 to i32
    %c0_i32_11 = arith.constant 0 : i32
    %23 = arith.cmpi ne, %22, %c0_i32_11 : i32
    scf.if %23 {
      %28 = vector.broadcast %9 : vector<8x1xf32> to vector<8x8xf32>
      %29 = arith.subf %5, %28 : vector<8x8xf32>
      %30 = math.exp %29 : vector<8x8xf32>
      %c0_16 = arith.constant 0 : index
      %c0_17 = arith.constant 0 : index
      %31 = vector.load %arg6[%c0_16, %c0_17] : memref<8x1xf32, #tpu.memory_space<vmem>>, vector<8x1xf32>
      %32 = arith.mulf %11, %31 : vector<8x1xf32>
      %cst_18 = arith.constant dense<0.000000e+00> : vector<8xf32>
      %33 = vector.multi_reduction <add>, %30, %cst_18 [1] : vector<8x8xf32> to vector<8xf32>
      %34 = vector.shape_cast %33 : vector<8xf32> to vector<8x1xf32>
      %35 = arith.addf %32, %34 : vector<8x1xf32>
      %c0_19 = arith.constant 0 : index
      %c0_20 = arith.constant 0 : index
      %36 = vector.load %arg6[%c0_19, %c0_20] : memref<8x1xf32, #tpu.memory_space<vmem>>, vector<8x1xf32>
      tpu.vector_store %arg6[%c0_19, %c0_20], %35 {strides = array<i32>} : memref<8x1xf32, #tpu.memory_space<vmem>>, vector<8x1xf32>,
    } else {
    }
    %c0_12 = arith.constant 0 : index
    %c0_13 = arith.constant 0 : index
    %24 = vector.load %arg5[%c0_12, %c0_13] : memref<8x1xf32, #tpu.memory_space<vmem>>, vector<8x1xf32>
    tpu.vector_store %arg5[%c0_12, %c0_13], %9 {strides = array<i32>} : memref<8x1xf32, #tpu.memory_space<vmem>>, vector<8x1xf32>,
    %c0_i32_14 = arith.constant 0 : i32
    %25 = arith.cmpi eq, %arg1, %c0_i32_14 : i32
    %26 = arith.extui %25 : i1 to i32
    %c0_i32_15 = arith.constant 0 : i32
    %27 = arith.cmpi ne, %26, %c0_i32_15 : i32
    scf.if %27 {
      %c0_16 = arith.constant 0 : index
      %c0_17 = arith.constant 0 : index
      %28 = vector.load %arg5[%c0_16, %c0_17] : memref<8x1xf32, #tpu.memory_space<vmem>>, vector<8x1xf32>
      %c0_18 = arith.constant 0 : index
      %c0_19 = arith.constant 0 : index
      %29 = vector.load %arg6[%c0_18, %c0_19] : memref<8x1xf32, #tpu.memory_space<vmem>>, vector<8x1xf32>
      %30 = math.log %29 : vector<8x1xf32>
      %31 = arith.addf %28, %30 : vector<8x1xf32>
      %c0_20 = arith.constant 0 : index
      %c0_21 = arith.constant 0 : index
      %32 = vector.load %arg4[%c0_20, %c0_21] : memref<8x1xf32, #tpu.memory_space<vmem>>, vector<8x1xf32>
      tpu.vector_store %arg4[%c0_20, %c0_21], %31 {strides = array<i32>} : memref<8x1xf32, #tpu.memory_space<vmem>>, vector<8x1xf32>,
    } else {
    }
    return
  }
  func.func @transform_0(%arg0: i32, %arg1: i32) -> (i32, i32) {
    %c0_i32 = arith.constant 0 : i32
    %c0_i32_0 = arith.constant 0 : i32
    return %arg0, %c0_i32 : i32, i32
  }
  func.func @transform_1(%arg0: i32, %arg1: i32) -> (i32, i32) {
    %c0_i32 = arith.constant 0 : i32
    %c0_i32_0 = arith.constant 0 : i32
    return %arg1, %c0_i32 : i32, i32
  }
  func.func @transform_2(%arg0: i32, %arg1: i32) -> (i32, i32) {
    %c0_i32 = arith.constant 0 : i32
    %c0_i32_0 = arith.constant 0 : i32
    return %arg0, %c0_i32 : i32, i32
  }
}

</mosaic_0001>

<llo_original>
// kernel: tpu_custom_call.1
$region0: #{tpu_custom_call.1}
  #allocation0 [shape = 'u32[]', space=smem, size = 0x4, offset = 0x4, fixed_abs, tag = 'smem constant byte address 0x4 - core index']
  #allocation1 [shape = 'u32[144,128]{1,0:T(1,128)}', space=vmem, size = 0x12000, scoped, tag = 'internal scratch']
  #allocation2 [shape = 'f32[8,1]{1,0:T(8,128)}', space=vmem, size = 0x1000, scoped, tag = 'scratch operand']
  #allocation3 [shape = 'f32[8,1]{1,0:T(8,128)}', space=vmem, size = 0x1000, scoped, tag = 'scratch operand']
  %s0 = inlined_call_operand.hbm [shape: f32[8,128], index: 0, kind: input, shape index: {}]
  %s1 = inlined_call_operand.hbm [shape: f32[8,128], index: 1, kind: input, shape index: {}]
  %s2 = inlined_call_operand.vmem [shape: f32[8,1], index: 2, kind: output, shape index: {}]
  %s3 = sld [smem:[#allocation0]]
  $region42: #{tpu_custom_call.1} parent=0
    _
  %s5 = ssub.s32 1, %s3
  %s6 = scalar_select 0, %s5, %s3
  $region1: #{tpu_custom_call.1} parent=0
    #allocation4 [shape = 'u8[4096]{0}', space=vmem, size = 0x1000, scoped, tag = 'input window, operand 0, single buffered']
    #allocation5 [shape = 's32[1]{0}', space=sflag, size = 0x4, scoped, tag = 'scoped memory for tpu_custom_call.1']
    #allocation6 [shape = 'u8[4096]{0}', space=vmem, size = 0x1000, scoped, tag = 'input window, operand 1, single buffered']
    #allocation7 [shape = 's32[1]{0}', space=sflag, size = 0x4, scoped, tag = 'scoped memory for tpu_custom_call.1']
    %7 = vsyncpa [#allocation5], 0
    %8 = vsyncpa [#allocation7], 0
    // Predicated region
    $region2: #{tpu_custom_call.1} parent=1 // pred_check
      _
    $region3: #{tpu_custom_call.1} parent=1 // pred_check_branch
      %10 = sbr.rel (0) target = $region5
    $region4: #{tpu_custom_call.1} parent=1 // pred_region
      %s12 = ssub.s32 128, 128
      %13 = vsyncadd [#allocation5], %s12
      %s15 = sshll.u32 [#allocation4], 4
      %s16 = int_to_ptr.vmem [resolvable:$true] %s15
      %18 = dma.hbm_to_vmem [thread:$0]  %s0, 128, %s16, [#allocation5]
    $region5: #{tpu_custom_call.1} parent=1 // pred_fallthru
      _
    // Predicated region
    $region6: #{tpu_custom_call.1} parent=1 // pred_check
      _
    $region7: #{tpu_custom_call.1} parent=1 // pred_check_branch
      %20 = sbr.rel (0) target = $region9
    $region8: #{tpu_custom_call.1} parent=1 // pred_region
      %s22 = ssub.s32 128, 128
      %23 = vsyncadd [#allocation7], %s22
      %s25 = sshll.u32 [#allocation6], 4
      %s26 = int_to_ptr.vmem [resolvable:$true] %s25
      %28 = dma.hbm_to_vmem [thread:$0]  %s1, 128, %s26, [#allocation7]
    $region9: #{tpu_custom_call.1} parent=1 // pred_fallthru
      _
    // Predicated region
    $region10: #{tpu_custom_call.1} parent=1 // pred_check
      _
    $region11: #{tpu_custom_call.1} parent=1 // pred_check_branch
      %30 = sbr.rel (0) target = $region13
    $region12: #{tpu_custom_call.1} parent=1 // pred_region
      %31 = dma.done [#allocation5], 128
    $region13: #{tpu_custom_call.1} parent=1 // pred_fallthru
      _
    // Predicated region
    $region14: #{tpu_custom_call.1} parent=1 // pred_check
      _
    $region15: #{tpu_custom_call.1} parent=1 // pred_check_branch
      %33 = sbr.rel (0) target = $region17
    $region16: #{tpu_custom_call.1} parent=1 // pred_region
      %34 = dma.done [#allocation7], 128
    $region17: #{tpu_custom_call.1} parent=1 // pred_fallthru
      _
    %p35 = scmp.eq.s32.totalorder 0, 0
    // Predicated region
    $region18: #{tpu_custom_call.1} parent=1 // pred_check
      %p36 = pneg %p35
    $region19: #{tpu_custom_call.1} parent=1 // pred_check_branch
      %38 = sbr.rel (%p36) target = $region21
    $region20: #{tpu_custom_call.1} parent=1 // pred_region
      %vm39 = vcmask 7168
      %40 = vst.msk [vmem:[#allocation2] sm:$0xff] %vm39, -1e+30
      %41 = vst.msk [vmem:[#allocation3] sm:$0xff] %vm39, 0.0
    $region21: #{tpu_custom_call.1} parent=1 // pred_fallthru
      _
    %v42 = vld [vmem:[#allocation4] sm:$0xff]
    %v43 = vld [vmem:[#allocation6] sm:$0xff]
    %44 = vmatprep.subr.mxu0 0.0
    %45 = vmatpush1.xpose.msra.mxu0 %v43
    %46 = vmatprep.subr.mxu0 0.0
    %47 = vmatpush1.xpose.msra.mxu0 0.0
    %48 = vmatprep.subr.mxu0 0.0
    %49 = vmatpush1.xpose.msra.mxu0 0.0
    %50 = vmatprep.subr.mxu0 0.0
    %51 = vmatpush1.xpose.msra.mxu0 0.0
    %52 = vmatprep.subr.mxu0 0.0
    %53 = vmatpush1.xpose.msra.mxu0 0.0
    %54 = vmatprep.subr.mxu0 0.0
    %55 = vmatpush1.xpose.msra.mxu0 0.0
    %56 = vmatprep.subr.mxu0 0.0
    %57 = vmatpush1.xpose.msra.mxu0 0.0
    %58 = vmatprep.subr.mxu0 0.0
    %59 = vmatpush1.xpose.msra.mxu0 0.0
    %60 = vmatprep.subr.mxu0 0.0
    %61 = vmatpush1.xpose.msra.mxu0 0.0
    %62 = vmatprep.subr.mxu0 0.0
    %63 = vmatpush1.xpose.msra.mxu0 0.0
    %64 = vmatprep.subr.mxu0 0.0
    %65 = vmatpush1.xpose.msra.mxu0 0.0
    %66 = vmatprep.subr.mxu0 0.0
    %67 = vmatpush1.xpose.msra.mxu0 0.0
    %68 = vmatprep.subr.mxu0 0.0
    %69 = vmatpush1.xpose.msra.mxu0 0.0
    %70 = vmatprep.subr.mxu0 0.0
    %71 = vmatpush1.xpose.msra.mxu0 0.0
    %72 = vmatprep.subr.mxu0 0.0
    %73 = vmatpush1.xpose.msra.mxu0 0.0
    %74 = vmatprep.subr.mxu0 0.0
    %75 = vmatpush1.xpose.msra.mxu0 0.0
    %76 = vmatprep.subr.mxu0 0.0
    %77 = vmatpush1.xpose.msra.mxu0 0.0
    %78 = vmatprep.subr.mxu0 0.0
    %79 = vmatpush1.xpose.msra.mxu0 0.0
    %80 = vmatprep.subr.mxu0 0.0
    %81 = vmatpush1.xpose.msra.mxu0 0.0
    %82 = vmatprep.subr.mxu0 0.0
    %83 = vmatpush1.xpose.msra.mxu0 0.0
    %84 = vmatprep.subr.mxu0 0.0
    %85 = vmatpush1.xpose.msra.mxu0 0.0
    %86 = vmatprep.subr.mxu0 0.0
    %87 = vmatpush1.xpose.msra.mxu0 0.0
    %88 = vmatprep.subr.mxu0 0.0
    %89 = vmatpush1.xpose.msra.mxu0 0.0
    %90 = vmatprep.subr.mxu0 0.0
    %91 = vmatpush1.xpose.msra.mxu0 0.0
    %92 = vmatprep.subr.mxu0 0.0
    %93 = vmatpush1.xpose.msra.mxu0 0.0
    %94 = vmatprep.subr.mxu0 0.0
    %95 = vmatpush1.xpose.msra.mxu0 0.0
    %96 = vmatprep.subr.mxu0 0.0
    %97 = vmatpush1.xpose.msra.mxu0 0.0
    %98 = vmatprep.subr.mxu0 0.0
    %99 = vmatpush1.xpose.msra.mxu0 0.0
    %100 = vmatprep.subr.mxu0 0.0
    %101 = vmatpush1.xpose.msra.mxu0 0.0
    %102 = vmatprep.subr.mxu0 0.0
    %103 = vmatpush1.xpose.msra.mxu0 0.0
    %104 = vmatprep.subr.mxu0 0.0
    %105 = vmatpush1.xpose.msra.mxu0 0.0
    %106 = vmatprep.subr.mxu0 0.0
    %107 = vmatpush1.xpose.msra.mxu0 0.0
    %108 = vmatprep.mubr.f32.mxu0 0.0
    %109 = vmatmul.mubr.f32.gmra.mrb[0].mxu0 %v42
    %v110 = vpop.f32.mrb[0].mxu0
    %v111 = vadd.f32 0.0, %v110
    %v112 = vpop.f32.mrb[0].mxu0
    %113 = vdwg.mxu0
    %v114 = vld [vmem:[#allocation2] sm:$0xff]
    %vm115 = vcmask 64512
    %v116 = vsel %vm115, %v111, -inf
    %117 = vmax.xlane.f32.xlu0 %v116
    %v118 = vpop.xlane.xlu0 %117
    %v119 = vmax.f32 %v114, %v118
    %v120 = vsub.f32 %v114, %v119
    %v121 = vmul.f32 %v120, 1.442695
    %v122 = vpow.pop %v121
    %s123 = smul.u32 0, 8
    %s124 = smul.u32 0, 8
    %s125 = sadd.s32 %s123, 8
    %p126 = scmp.lt.s32.totalorder %s124, %s125
    %s127 = sadd.s32 %s124, 8
    %p128 = scmp.lt.s32.totalorder %s123, %s127
    %p129 = pnand %p126, %p128
    %p130 = pneg %p129
    // Predicated region
    $region22: #{tpu_custom_call.1} parent=1 // pred_check
      _
    $region23: #{tpu_custom_call.1} parent=1 // pred_check_branch
      %132 = sbr.rel (%p129) target = $region25
    $region24: #{tpu_custom_call.1} parent=1 // pred_region
      %v133 = vlaneseq
      %v134 = vshrl.u32 %v133, 7
      %v135 = vstv %s123
      %v136 = vadd.s32 %v135, %v134
      %v137 = vlaneseq
      %v138 = vand.u32 %v137, 127
      %v139 = vstv %s124
      %v140 = vadd.s32 %v139, %v138
      %vm141 = vcmp.ne.s32.totalorder %v136, %v140
      %v142 = vsel %vm141, 1, 0
      %v143 = vcvt.s32.f32 %v142
      %145 = vset.pattern.permute.xlu0 0
      %146 = vperm.xlu0 %145, %v119
      %v147 = vpop.permute.xlu0 %146
      %v149 = vsub.f32 %v111, %v147
      %v150 = vmul.f32 %v149, 1.442695
      %v151 = vpow.pop %v150
      %v152 = vmul.f32 %v151, %v143
      %v153 = vld [vmem:[#allocation3] sm:$0xff]
      %v154 = vmul.f32 %v122, %v153
      %v155 = vsel %vm115, %v152, 0.0
      %156 = vadd.xlane.f32.xlu0 %v155
      %v157 = vpop.xlane.xlu0 %156
      %v158 = vadd.f32 %v154, %v157
      %vm159 = vcmask 7168
      %160 = vst.msk [vmem:[#allocation3] sm:$0xff] %vm159, %v158
    $region25: #{tpu_custom_call.1} parent=1 // pred_fallthru
      _
    %p161 = pneg %p130
    // Predicated region
    $region26: #{tpu_custom_call.1} parent=1 // pred_check
      _
    $region27: #{tpu_custom_call.1} parent=1 // pred_check_branch
      %163 = sbr.rel (%p130) target = $region29
    $region28: #{tpu_custom_call.1} parent=1 // pred_region
      %165 = vset.pattern.permute.xlu0 0
      %166 = vperm.xlu0 %165, %v119
      %v167 = vpop.permute.xlu0 %166
      %v169 = vsub.f32 %v111, %v167
      %v170 = vmul.f32 %v169, 1.442695
      %v171 = vpow.pop %v170
      %v172 = vld [vmem:[#allocation3] sm:$0xff]
      %v173 = vmul.f32 %v122, %v172
      %v174 = vsel %vm115, %v171, 0.0
      %175 = vadd.xlane.f32.xlu0 %v174
      %v176 = vpop.xlane.xlu0 %175
      %v177 = vadd.f32 %v173, %v176
      %vm178 = vcmask 7168
      %179 = vst.msk [vmem:[#allocation3] sm:$0xff] %vm178, %v177
    $region29: #{tpu_custom_call.1} parent=1 // pred_fallthru
      _
    %vm180 = vcmask 7168
    %181 = vst.msk [vmem:[#allocation2] sm:$0xff] %vm180, %v119
    // Predicated region
    $region30: #{tpu_custom_call.1} parent=1 // pred_check
      %p182 = pneg %p35
    $region31: #{tpu_custom_call.1} parent=1 // pred_check_branch
      %184 = sbr.rel (%p182) target = $region33
    $region32: #{tpu_custom_call.1} parent=1 // pred_region
      %v185 = vld [vmem:[#allocation2] sm:$0xff]
      %v186 = vld [vmem:[#allocation3] sm:$0xff]
      %v187 = vlog2.pop %v186
      %v188 = vmul.f32 %v187, 0.6931472
      %v189 = vadd.f32 %v185, %v188
      %190 = vst.msk [vmem:[%s2] sm:$0xff] %vm180, %v189
    $region33: #{tpu_custom_call.1} parent=1 // pred_fallthru
      _
    // Predicated region
    $region34: #{tpu_custom_call.1} parent=1 // pred_check
      _
    $region35: #{tpu_custom_call.1} parent=1 // pred_check_branch
      %192 = sbr.rel (0) target = $region37
    $region36: #{tpu_custom_call.1} parent=1 // pred_region
      _
    $region37: #{tpu_custom_call.1} parent=1 // pred_fallthru
      _
    // Predicated region
    $region38: #{tpu_custom_call.1} parent=1 // pred_check
      _
    $region39: #{tpu_custom_call.1} parent=1 // pred_check_branch
      %194 = sbr.rel (0) target = $region41
    $region40: #{tpu_custom_call.1} parent=1 // pred_region
      _
    $region41: #{tpu_custom_call.1} parent=1 // pred_fallthru
      _
    %195 = vsyncpa [#allocation5], 1
    %196 = vsyncpa [#allocation7], 1

</llo_original>
